<compile_context>
chip_gen: v5e
topology: v5e:2x2
jax: 0.10.0
libtpu: 0.0.40
codegen_flags: <defaults>
</compile_context>

<pallas_src>
import math
from functools import partial

import jax
import jax.numpy as jnp
from jax.experimental import pallas as pl
from jax.experimental.pallas import tpu as pltpu


# ----------------------------------------------------------------------------
# Kernels
# ----------------------------------------------------------------------------
def kv_proj_kernel(x_ref, xT_ref, wk_ref, bk_ref, wv_ref, bv_ref,
                   kT_ref, v_ref, *, n_heads):
    """Per-batch K/V projection into head-major layouts.

    K is produced directly transposed:  K^T_h (hd, S) = Wk_h (hd, D) @ x^T
    (lane-dense in S, natural MXU orientation for the score matmul).
    V stays natural:                    V_h (S, hd) = x @ WvT_h (D, hd).
    """
    f32 = jnp.float32
    xs = x_ref[0]        # (S, D)  compute dtype
    xts = xT_ref[0]      # (D, S)  compute dtype
    for h in range(n_heads):          # static loop, unrolled
        kT_ref[0, h] = (jnp.dot(wk_ref[h], xts, preferred_element_type=f32)
                        + bk_ref[h]).astype(kT_ref.dtype)
        v_ref[0, h] = (jnp.dot(xs, wv_ref[h], preferred_element_type=f32)
                       + bv_ref[h]).astype(v_ref.dtype)


def encoder_block_kernel(xq_ref, kT_ref, v_ref,
                         wq_ref, bq_ref, wo_ref, bo_ref,
                         w1_ref, b1_ref, w2_ref, b2_ref,
                         g1_ref, be1_ref, g2_ref, be2_ref,
                         o_ref, *, n_heads):
    eps = 1e-5                         # PyTorch LayerNorm default
    f32 = jnp.float32
    cdt = wq_ref.dtype                 # matmul compute dtype (bf16 by default)
    H = n_heads

    x_q = xq_ref[0]                    # (TS, D) compute dtype
    x_res = x_q.astype(f32)            # residual kept in f32

    # ---- multi-head self-attention: one static per-head pass ---------------
    # Every intermediate is a plain 2-D tile; no head slicing / stacking
    # across the 128-lane boundary.  1/sqrt(hd) is pre-folded into Wq/bq.
    attn_out = None
    for h in range(H):                 # static loop, unrolled
        q_h = jnp.dot(x_q, wq_ref[h], preferred_element_type=f32) + bq_ref[h]
        s = jnp.dot(q_h.astype(cdt), kT_ref[0, h],
                    preferred_element_type=f32)               # (TS, S)
        s = s - jnp.max(s, axis=-1, keepdims=True)
        p = jnp.exp(s)   # TODO(synk): bf16 exp on v6e/v7x if EUP-bound
        p = p * (1.0 / jnp.sum(p, axis=-1, keepdims=True))    # exact recip
        ctx = jnp.dot(p.astype(cdt), v_ref[0, h],
                      preferred_element_type=f32)             # (TS, hd)
        part = jnp.dot(ctx.astype(cdt), wo_ref[h],
                       preferred_element_type=f32)            # (TS, D)
        attn_out = part if attn_out is None else attn_out + part
    attn_out = attn_out + bo_ref[...]

    # ---- residual + LayerNorm 1 (f32) ---------------------------------------
    x1 = x_res + attn_out
    mu1 = jnp.mean(x1, axis=-1, keepdims=True)
    var1 = jnp.mean(jnp.square(x1 - mu1), axis=-1, keepdims=True)
    x1n = (x1 - mu1) * jax.lax.rsqrt(var1 + eps) * g1_ref[...] + be1_ref[...]

    # ---- feed-forward network ------------------------------------------------
    h1 = jnp.dot(x1n.astype(cdt), w1_ref[...],
                 preferred_element_type=f32) + b1_ref[...]
    h1 = jnp.maximum(h1, 0.0)                                  # ReLU
    ff = jnp.dot(h1.astype(cdt), w2_ref[...],
                 preferred_element_type=f32) + b2_ref[...]

    # ---- residual + LayerNorm 2 (f32) ----------------------------------------
    x2 = x1n + ff
    mu2 = jnp.mean(x2, axis=-1, keepdims=True)
    var2 = jnp.mean(jnp.square(x2 - mu2), axis=-1, keepdims=True)
    x2n = (x2 - mu2) * jax.lax.rsqrt(var2 + eps) * g2_ref[...] + be2_ref[...]

    o_ref[0] = x2n.astype(o_ref.dtype)


# ----------------------------------------------------------------------------
# Wrapper helpers
# ----------------------------------------------------------------------------
def _vmem_limit_bytes():
    try:
        cap = pltpu.get_tpu_info().vmem_capacity_bytes
    except Exception:                  # hardware query only; conservative v7x default
        cap = 64 * 1024 * 1024
    return int(min(cap * 7 // 8, 100 * 1024 * 1024))


def _default_seq_tile(S):
    # Bigger query tiles amortize per-grid-step overhead and feed the 256-wide
    # MXU (v6e) better; stay at 128 where VMEM is tight (v7x: 64 MiB per TC).
    if S % 256 == 0 and _vmem_limit_bytes() >= 100 * 1024 * 1024:
        return 256
    if S % 128 == 0:
        return 128
    return S


def _prep_attention_weights(params, D, n_heads, cdt):
    """Pre-reshape / pre-transpose / cast all attention weights once."""
    f32 = jnp.float32
    hd = D // n_heads
    scale = 1.0 / math.sqrt(hd)
    in_w = params["in_w"]                                   # (3D, D)
    in_b = params["in_b"].reshape(3 * D)
    # Q: scale folded into weights/bias; (H, D, hd) so q_h = x @ WqT_h.
    wq = (in_w[0 * D:1 * D].reshape(n_heads, hd, D) * scale) \
        .transpose(0, 2, 1).astype(cdt)
    bq = (in_b[0 * D:1 * D] * scale).reshape(n_heads, 1, hd).astype(f32)
    # K: kept row-major (H, hd, D) so K^T_h = Wk_h @ x^T  (lane-dense in S).
    wk = in_w[1 * D:2 * D].reshape(n_heads, hd, D).astype(cdt)
    bk = in_b[1 * D:2 * D].reshape(n_heads, hd, 1).astype(f32)
    # V: (H, D, hd) so V_h = x @ WvT_h.
    wv = in_w[2 * D:3 * D].reshape(n_heads, hd, D).transpose(0, 2, 1).astype(cdt)
    bv = in_b[2 * D:3 * D].reshape(n_heads, 1, hd).astype(f32)
    # Output projection folded per head:  attn = sum_h ctx_h @ WoT_h.
    wo = params["out_w"].T.reshape(n_heads, hd, D).astype(cdt)
    bo = params["out_b"].reshape(1, D).astype(f32)
    return wq, bq, wk, bk, wv, bv, wo, bo


def _prep_mlp_weights(params, D, dff, cdt):
    f32 = jnp.float32
    w1 = params["w1"].T.astype(cdt)                          # (D, dff)
    b1 = params["b1"].reshape(1, dff).astype(f32)
    w2 = params["w2"].T.astype(cdt)                          # (dff, D)
    b2 = params["b2"].reshape(1, D).astype(f32)
    g1 = params["ln1_g"].reshape(1, D).astype(f32)
    be1 = params["ln1_b"].reshape(1, D).astype(f32)
    g2 = params["ln2_g"].reshape(1, D).astype(f32)
    be2 = params["ln2_b"].reshape(1, D).astype(f32)
    return w1, b1, w2, b2, g1, be1, g2, be2


def _kv_projection(x_c, wk, bk, wv, bv, n_heads, vmem_limit):
    B, S, D = x_c.shape
    hd = D // n_heads
    cdt = x_c.dtype
    xT_c = jnp.swapaxes(x_c, 1, 2)          # one cheap XLA transpose per call

    def const(shape):
        n = len(shape)
        return pl.BlockSpec(shape, lambda b: (0,) * n)

    return pl.pallas_call(
        partial(kv_proj_kernel, n_heads=n_heads),
        out_shape=(jax.ShapeDtypeStruct((B, n_heads, hd, S), cdt),   # K^T
                   jax.ShapeDtypeStruct((B, n_heads, S, hd), cdt)),  # V
        grid=(B,),
        in_specs=[
            pl.BlockSpec((1, S, D), lambda b: (b, 0, 0)),            # x
            pl.BlockSpec((1, D, S), lambda b: (b, 0, 0)),            # x^T
            const((n_heads, hd, D)), const((n_heads, hd, 1)),        # Wk, bk
            const((n_heads, D, hd)), const((n_heads, 1, hd)),        # Wv, bv
        ],
        out_specs=(pl.BlockSpec((1, n_heads, hd, S), lambda b: (b, 0, 0, 0)),
                   pl.BlockSpec((1, n_heads, S, hd), lambda b: (b, 0, 0, 0))),
        compiler_params=pltpu.CompilerParams(
            dimension_semantics=("parallel",),
            vmem_limit_bytes=vmem_limit),
    )(x_c, xT_c, wk, bk, wv, bv)


def encoder_block(x, params, *, n_heads, matmul_dtype=jnp.bfloat16, seq_tile=None):
    B, S, D = x.shape
    assert D % n_heads == 0, "d_model must be divisible by n_heads"
    dff = params["w1"].shape[0]
    hd = D // n_heads
    if seq_tile is None:
        seq_tile = _default_seq_tile(S)
    assert S % seq_tile == 0, "seq_tile must divide S"
    TS = seq_tile
    T = S // TS
    cdt = matmul_dtype
    vmem_limit = _vmem_limit_bytes()

    wq, bq, wk, bk, wv, bv, wo, bo = _prep_attention_weights(params, D, n_heads, cdt)
    w1, b1, w2, b2, g1, be1, g2, be2 = _prep_mlp_weights(params, D, dff, cdt)

    x_c = x.astype(cdt)                      # bf16 halves x DMA + VMEM residency
    kT, v = _kv_projection(x_c, wk, bk, wv, bv, n_heads, vmem_limit)

    def const(shape):
        n = len(shape)
        return pl.BlockSpec(shape, lambda b, t: (0,) * n)

    in_specs = [
        pl.BlockSpec((1, TS, D), lambda b, t: (b, t, 0)),              # query tile
        pl.BlockSpec((1, n_heads, hd, S), lambda b, t: (b, 0, 0, 0)),  # K^T
        pl.BlockSpec((1, n_heads, S, hd), lambda b, t: (b, 0, 0, 0)),  # V
        const((n_heads, D, hd)), const((n_heads, 1, hd)),              # Wq, bq
        const((n_heads, hd, D)), const((1, D)),                        # Wo, bo
        const((D, dff)), const((1, dff)),                              # W1, b1
        const((dff, D)), const((1, D)),                                # W2, b2
        const((1, D)), const((1, D)),                                  # norm1 g, b
        const((1, D)), const((1, D)),                                  # norm2 g, b
    ]
    out_spec = pl.BlockSpec((1, TS, D), lambda b, t: (b, t, 0))

    return pl.pallas_call(
        partial(encoder_block_kernel, n_heads=n_heads),
        out_shape=jax.ShapeDtypeStruct((B, S, D), x.dtype),
        grid=(B, T),
        in_specs=in_specs,
        out_specs=out_spec,
        compiler_params=pltpu.CompilerParams(
            dimension_semantics=("parallel", "parallel"),
            vmem_limit_bytes=vmem_limit),
    )(x_c, kT, v, wq, bq, wo, bo, w1, b1, w2, b2, g1, be1, g2, be2)


# ----------------------------------------------------------------------------
# Pure-JAX reference (f32) + params
# ----------------------------------------------------------------------------
def _layer_norm(x, g, b, eps=1e-5):
    mu = jnp.mean(x, axis=-1, keepdims=True)
    var = jnp.mean(jnp.square(x - mu), axis=-1, keepdims=True)
    return (x - mu) * jax.lax.rsqrt(var + eps) * g + b


def encoder_block_reference(x, params, *, n_heads):
    B, S, D = x.shape
    hd = D // n_heads
    scale = 1.0 / math.sqrt(hd)
    in_w = params["in_w"]
    in_b = params["in_b"].reshape(-1)
    qkv = jnp.einsum('bsd,ed->bse', x, in_w) + in_b
    q, k, v = qkv[..., :D], qkv[..., D:2 * D], qkv[..., 2 * D:]
    q = q.reshape(B, S, n_heads, hd).transpose(0, 2, 1, 3) * scale
    k = k.reshape(B, S, n_heads, hd).transpose(0, 2, 1, 3)
    v = v.reshape(B, S, n_heads, hd).transpose(0, 2, 1, 3)
    s = jnp.einsum('bhqd,bhkd->bhqk', q, k)
    p = jax.nn.softmax(s, axis=-1)
    ctx = jnp.einsum('bhqk,bhkd->bhqd', p, v).transpose(0, 2, 1, 3).reshape(B, S, D)
    attn_out = ctx @ params["out_w"].T + params["out_b"].reshape(-1)
    x1 = _layer_norm(x + attn_out, params["ln1_g"].reshape(-1), params["ln1_b"].reshape(-1))
    h1 = jax.nn.relu(x1 @ params["w1"].T + params["b1"].reshape(-1))
    ff = h1 @ params["w2"].T + params["b2"].reshape(-1)
    return _layer_norm(x1 + ff, params["ln2_g"].reshape(-1), params["ln2_b"].reshape(-1))


def init_params(key, d_model, n_heads, dim_feedforward):
    ks = jax.random.split(key, 8)
    s = 0.02
    return {
        "in_w":  s * jax.random.normal(ks[0], (3 * d_model, d_model), jnp.float32),
        "in_b":  s * jax.random.normal(ks[1], (1, 3 * d_model), jnp.float32),
        "out_w": s * jax.random.normal(ks[2], (d_model, d_model), jnp.float32),
        "out_b": s * jax.random.normal(ks[3], (1, d_model), jnp.float32),
        "w1":    s * jax.random.normal(ks[4], (dim_feedforward, d_model), jnp.float32),
        "b1":    s * jax.random.normal(ks[5], (1, dim_feedforward), jnp.float32),
        "w2":    s * jax.random.normal(ks[6], (d_model, dim_feedforward), jnp.float32),
        "b2":    s * jax.random.normal(ks[7], (1, d_model), jnp.float32),
        "ln1_g": jnp.ones((1, d_model), jnp.float32),
        "ln1_b": jnp.zeros((1, d_model), jnp.float32),
        "ln2_g": jnp.ones((1, d_model), jnp.float32),
        "ln2_b": jnp.zeros((1, d_model), jnp.float32),
    }


if __name__ == "__main__":
    B, S, D = 2, 8, 32
    n_heads = 4
    dim_feedforward = 64

    key = jax.random.PRNGKey(0)
    k_x, k_p = jax.random.split(key)
    x = jax.random.normal(k_x, (B, S, D), jnp.float32)
    params = init_params(k_p, D, n_heads, dim_feedforward)

    out = encoder_block(x, params, n_heads=n_heads)
    out = jax.block_until_ready(out)

    assert out.shape == (B, S, D)
    assert bool(jnp.all(jnp.isfinite(out)))

    # Loose-tolerance check vs f32 reference (kernel matmuls / x run in bf16).
    ref = encoder_block_reference(x, params, n_heads=n_heads)
    max_err = float(jnp.max(jnp.abs(out.astype(jnp.float32) - ref)))
    assert max_err < 1e-1, f"max abs error vs reference: {max_err}"

    print("KERNEL_OK")
</pallas_src>

<mosaic_0001>
module attributes {stable_mosaic.version = 11 : i64} {
  func.func @kv_proj_kernel(%arg0: i32, %arg1: memref<1x8x32xbf16, #tpu.memory_space<vmem>>, %arg2: memref<1x32x8xbf16, #tpu.memory_space<vmem>>, %arg3: memref<4x8x32xbf16, #tpu.memory_space<vmem>>, %arg4: memref<4x8x1xf32, #tpu.memory_space<vmem>>, %arg5: memref<4x32x8xbf16, #tpu.memory_space<vmem>>, %arg6: memref<4x1x8xf32, #tpu.memory_space<vmem>>, %arg7: memref<1x4x8x8xbf16, #tpu.memory_space<vmem>>, %arg8: memref<1x4x8x8xbf16, #tpu.memory_space<vmem>>) attributes {dimension_semantics = [#tpu.dimension_semantics<parallel>], iteration_bounds = array<i64: 2>, scalar_prefetch = 0 : i64, scratch_operands = 0 : i64, tpu.core_type = #tpu.core_type<tc>, window_params = [{transform_indices = @transform_0, window_bounds = array<i64: 1, 8, 32>}, {transform_indices = @transform_1, window_bounds = array<i64: 1, 32, 8>}, {pipeline_mode = #tpu.pipeline_mode<synchronous>, transform_indices = @transform_2, window_bounds = array<i64: 4, 8, 32>}, {pipeline_mode = #tpu.pipeline_mode<synchronous>, transform_indices = @transform_3, window_bounds = array<i64: 4, 8, 1>}, {pipeline_mode = #tpu.pipeline_mode<synchronous>, transform_indices = @transform_4, window_bounds = array<i64: 4, 32, 8>}, {pipeline_mode = #tpu.pipeline_mode<synchronous>, transform_indices = @transform_5, window_bounds = array<i64: 4, 1, 8>}, {transform_indices = @transform_6, window_bounds = array<i64: 1, 4, 8, 8>}, {transform_indices = @transform_7, window_bounds = array<i64: 1, 4, 8, 8>}]} {
    %c0 = arith.constant 0 : index
    %c0_0 = arith.constant 0 : index
    %c0_1 = arith.constant 0 : index
    %0 = vector.load %arg1[%c0, %c0_0, %c0_1] : memref<1x8x32xbf16, #tpu.memory_space<vmem>>, vector<1x8x32xbf16>
    %1 = vector.shape_cast %0 : vector<1x8x32xbf16> to vector<8x32xbf16>
    %c0_2 = arith.constant 0 : index
    %c0_3 = arith.constant 0 : index
    %c0_4 = arith.constant 0 : index
    %2 = vector.load %arg2[%c0_2, %c0_3, %c0_4] : memref<1x32x8xbf16, #tpu.memory_space<vmem>>, vector<1x32x8xbf16>
    %3 = vector.shape_cast %2 : vector<1x32x8xbf16> to vector<32x8xbf16>
    %c0_5 = arith.constant 0 : index
    %c0_6 = arith.constant 0 : index
    %c0_7 = arith.constant 0 : index
    %4 = vector.load %arg3[%c0_5, %c0_6, %c0_7] : memref<4x8x32xbf16, #tpu.memory_space<vmem>>, vector<1x8x32xbf16>
    %5 = vector.shape_cast %4 : vector<1x8x32xbf16> to vector<8x32xbf16>
    %cst = arith.constant dense<0.000000e+00> : vector<8x8xf32>
    %6 = tpu.matmul %5, %3, %cst {dimension_numbers = #tpu.dot_dimension_numbers<[1], [0], [0], [1], [0, 0, 1, 1], [], []>} : vector<8x32xbf16>, vector<32x8xbf16>, vector<8x8xf32> -> vector<8x8xf32>
    %c0_8 = arith.constant 0 : index
    %c0_9 = arith.constant 0 : index
    %c0_10 = arith.constant 0 : index
    %7 = vector.load %arg4[%c0_8, %c0_9, %c0_10] : memref<4x8x1xf32, #tpu.memory_space<vmem>>, vector<1x8x1xf32>
    %8 = vector.shape_cast %7 : vector<1x8x1xf32> to vector<8x1xf32>
    %9 = vector.broadcast %8 : vector<8x1xf32> to vector<8x8xf32>
    %10 = arith.addf %6, %9 : vector<8x8xf32>
    %11 = arith.truncf %10 : vector<8x8xf32> to vector<8x8xbf16>
    %c0_11 = arith.constant 0 : index
    %c0_12 = arith.constant 0 : index
    %c0_13 = arith.constant 0 : index
    %c0_14 = arith.constant 0 : index
    %12 = vector.load %arg7[%c0_11, %c0_12, %c0_13, %c0_14] : memref<1x4x8x8xbf16, #tpu.memory_space<vmem>>, vector<1x1x8x8xbf16>
    %13 = vector.shape_cast %12 : vector<1x1x8x8xbf16> to vector<8x8xbf16>
    %14 = vector.shape_cast %11 : vector<8x8xbf16> to vector<1x1x8x8xbf16>
    tpu.vector_store %arg7[%c0_11, %c0_12, %c0_13, %c0_14], %14 {strides = array<i32>} : memref<1x4x8x8xbf16, #tpu.memory_space<vmem>>, vector<1x1x8x8xbf16>,
    %c0_15 = arith.constant 0 : index
    %c0_16 = arith.constant 0 : index
    %c0_17 = arith.constant 0 : index
    %15 = vector.load %arg5[%c0_15, %c0_16, %c0_17] : memref<4x32x8xbf16, #tpu.memory_space<vmem>>, vector<1x32x8xbf16>
    %16 = vector.shape_cast %15 : vector<1x32x8xbf16> to vector<32x8xbf16>
    %cst_18 = arith.constant dense<0.000000e+00> : vector<8x8xf32>
    %17 = tpu.matmul %1, %16, %cst_18 {dimension_numbers = #tpu.dot_dimension_numbers<[1], [0], [0], [1], [0, 0, 1, 1], [], []>} : vector<8x32xbf16>, vector<32x8xbf16>, vector<8x8xf32> -> vector<8x8xf32>
    %c0_19 = arith.constant 0 : index
    %c0_20 = arith.constant 0 : index
    %c0_21 = arith.constant 0 : index
    %18 = vector.load %arg6[%c0_19, %c0_20, %c0_21] : memref<4x1x8xf32, #tpu.memory_space<vmem>>, vector<1x1x8xf32>
    %19 = vector.shape_cast %18 : vector<1x1x8xf32> to vector<1x8xf32>
    %20 = vector.broadcast %19 : vector<1x8xf32> to vector<8x8xf32>
    %21 = arith.addf %17, %20 : vector<8x8xf32>
    %22 = arith.truncf %21 : vector<8x8xf32> to vector<8x8xbf16>
    %c0_22 = arith.constant 0 : index
    %c0_23 = arith.constant 0 : index
    %c0_24 = arith.constant 0 : index
    %c0_25 = arith.constant 0 : index
    %23 = vector.load %arg8[%c0_22, %c0_23, %c0_24, %c0_25] : memref<1x4x8x8xbf16, #tpu.memory_space<vmem>>, vector<1x1x8x8xbf16>
    %24 = vector.shape_cast %23 : vector<1x1x8x8xbf16> to vector<8x8xbf16>
    %25 = vector.shape_cast %22 : vector<8x8xbf16> to vector<1x1x8x8xbf16>
    tpu.vector_store %arg8[%c0_22, %c0_23, %c0_24, %c0_25], %25 {strides = array<i32>} : memref<1x4x8x8xbf16, #tpu.memory_space<vmem>>, vector<1x1x8x8xbf16>,
    %c1 = arith.constant 1 : index
    %c0_26 = arith.constant 0 : index
    %c0_27 = arith.constant 0 : index
    %26 = vector.load %arg3[%c1, %c0_26, %c0_27] : memref<4x8x32xbf16, #tpu.memory_space<vmem>>, vector<1x8x32xbf16>
    %27 = vector.shape_cast %26 : vector<1x8x32xbf16> to vector<8x32xbf16>
    %cst_28 = arith.constant dense<0.000000e+00> : vector<8x8xf32>
    %28 = tpu.matmul %27, %3, %cst_28 {dimension_numbers = #tpu.dot_dimension_numbers<[1], [0], [0], [1], [0, 0, 1, 1], [], []>} : vector<8x32xbf16>, vector<32x8xbf16>, vector<8x8xf32> -> vector<8x8xf32>
    %c1_29 = arith.constant 1 : index
    %c0_30 = arith.constant 0 : index
    %c0_31 = arith.constant 0 : index
    %29 = vector.load %arg4[%c1_29, %c0_30, %c0_31] : memref<4x8x1xf32, #tpu.memory_space<vmem>>, vector<1x8x1xf32>
    %30 = vector.shape_cast %29 : vector<1x8x1xf32> to vector<8x1xf32>
    %31 = vector.broadcast %30 : vector<8x1xf32> to vector<8x8xf32>
    %32 = arith.addf %28, %31 : vector<8x8xf32>
    %33 = arith.truncf %32 : vector<8x8xf32> to vector<8x8xbf16>
    %c0_32 = arith.constant 0 : index
    %c1_33 = arith.constant 1 : index
    %c0_34 = arith.constant 0 : index
    %c0_35 = arith.constant 0 : index
    %34 = vector.load %arg7[%c0_32, %c1_33, %c0_34, %c0_35] : memref<1x4x8x8xbf16, #tpu.memory_space<vmem>>, vector<1x1x8x8xbf16>
    %35 = vector.shape_cast %34 : vector<1x1x8x8xbf16> to vector<8x8xbf16>
    %36 = vector.shape_cast %33 : vector<8x8xbf16> to vector<1x1x8x8xbf16>
    tpu.vector_store %arg7[%c0_32, %c1_33, %c0_34, %c0_35], %36 {strides = array<i32>} : memref<1x4x8x8xbf16, #tpu.memory_space<vmem>>, vector<1x1x8x8xbf16>,
    %c1_36 = arith.constant 1 : index
    %c0_37 = arith.constant 0 : index
    %c0_38 = arith.constant 0 : index
    %37 = vector.load %arg5[%c1_36, %c0_37, %c0_38] : memref<4x32x8xbf16, #tpu.memory_space<vmem>>, vector<1x32x8xbf16>
    %38 = vector.shape_cast %37 : vector<1x32x8xbf16> to vector<32x8xbf16>
    %cst_39 = arith.constant dense<0.000000e+00> : vector<8x8xf32>
    %39 = tpu.matmul %1, %38, %cst_39 {dimension_numbers = #tpu.dot_dimension_numbers<[1], [0], [0], [1], [0, 0, 1, 1], [], []>} : vector<8x32xbf16>, vector<32x8xbf16>, vector<8x8xf32> -> vector<8x8xf32>
    %c1_40 = arith.constant 1 : index
    %c0_41 = arith.constant 0 : index
    %c0_42 = arith.constant 0 : index
    %40 = vector.load %arg6[%c1_40, %c0_41, %c0_42] : memref<4x1x8xf32, #tpu.memory_space<vmem>>, vector<1x1x8xf32>
    %41 = vector.shape_cast %40 : vector<1x1x8xf32> to vector<1x8xf32>
    %42 = vector.broadcast %41 : vector<1x8xf32> to vector<8x8xf32>
    %43 = arith.addf %39, %42 : vector<8x8xf32>
    %44 = arith.truncf %43 : vector<8x8xf32> to vector<8x8xbf16>
    %c0_43 = arith.constant 0 : index
    %c1_44 = arith.constant 1 : index
    %c0_45 = arith.constant 0 : index
    %c0_46 = arith.constant 0 : index
    %45 = vector.load %arg8[%c0_43, %c1_44, %c0_45, %c0_46] : memref<1x4x8x8xbf16, #tpu.memory_space<vmem>>, vector<1x1x8x8xbf16>
    %46 = vector.shape_cast %45 : vector<1x1x8x8xbf16> to vector<8x8xbf16>
    %47 = vector.shape_cast %44 : vector<8x8xbf16> to vector<1x1x8x8xbf16>
    tpu.vector_store %arg8[%c0_43, %c1_44, %c0_45, %c0_46], %47 {strides = array<i32>} : memref<1x4x8x8xbf16, #tpu.memory_space<vmem>>, vector<1x1x8x8xbf16>,
    %c2 = arith.constant 2 : index
    %c0_47 = arith.constant 0 : index
    %c0_48 = arith.constant 0 : index
    %48 = vector.load %arg3[%c2, %c0_47, %c0_48] : memref<4x8x32xbf16, #tpu.memory_space<vmem>>, vector<1x8x32xbf16>
    %49 = vector.shape_cast %48 : vector<1x8x32xbf16> to vector<8x32xbf16>
    %cst_49 = arith.constant dense<0.000000e+00> : vector<8x8xf32>
    %50 = tpu.matmul %49, %3, %cst_49 {dimension_numbers = #tpu.dot_dimension_numbers<[1], [0], [0], [1], [0, 0, 1, 1], [], []>} : vector<8x32xbf16>, vector<32x8xbf16>, vector<8x8xf32> -> vector<8x8xf32>
    %c2_50 = arith.constant 2 : index
    %c0_51 = arith.constant 0 : index
    %c0_52 = arith.constant 0 : index
    %51 = vector.load %arg4[%c2_50, %c0_51, %c0_52] : memref<4x8x1xf32, #tpu.memory_space<vmem>>, vector<1x8x1xf32>
    %52 = vector.shape_cast %51 : vector<1x8x1xf32> to vector<8x1xf32>
    %53 = vector.broadcast %52 : vector<8x1xf32> to vector<8x8xf32>
    %54 = arith.addf %50, %53 : vector<8x8xf32>
    %55 = arith.truncf %54 : vector<8x8xf32> to vector<8x8xbf16>
    %c0_53 = arith.constant 0 : index
    %c2_54 = arith.constant 2 : index
    %c0_55 = arith.constant 0 : index
    %c0_56 = arith.constant 0 : index
    %56 = vector.load %arg7[%c0_53, %c2_54, %c0_55, %c0_56] : memref<1x4x8x8xbf16, #tpu.memory_space<vmem>>, vector<1x1x8x8xbf16>
    %57 = vector.shape_cast %56 : vector<1x1x8x8xbf16> to vector<8x8xbf16>
    %58 = vector.shape_cast %55 : vector<8x8xbf16> to vector<1x1x8x8xbf16>
    tpu.vector_store %arg7[%c0_53, %c2_54, %c0_55, %c0_56], %58 {strides = array<i32>} : memref<1x4x8x8xbf16, #tpu.memory_space<vmem>>, vector<1x1x8x8xbf16>,
    %c2_57 = arith.constant 2 : index
    %c0_58 = arith.constant 0 : index
    %c0_59 = arith.constant 0 : index
    %59 = vector.load %arg5[%c2_57, %c0_58, %c0_59] : memref<4x32x8xbf16, #tpu.memory_space<vmem>>, vector<1x32x8xbf16>
    %60 = vector.shape_cast %59 : vector<1x32x8xbf16> to vector<32x8xbf16>
    %cst_60 = arith.constant dense<0.000000e+00> : vector<8x8xf32>
    %61 = tpu.matmul %1, %60, %cst_60 {dimension_numbers = #tpu.dot_dimension_numbers<[1], [0], [0], [1], [0, 0, 1, 1], [], []>} : vector<8x32xbf16>, vector<32x8xbf16>, vector<8x8xf32> -> vector<8x8xf32>
    %c2_61 = arith.constant 2 : index
    %c0_62 = arith.constant 0 : index
    %c0_63 = arith.constant 0 : index
    %62 = vector.load %arg6[%c2_61, %c0_62, %c0_63] : memref<4x1x8xf32, #tpu.memory_space<vmem>>, vector<1x1x8xf32>
    %63 = vector.shape_cast %62 : vector<1x1x8xf32> to vector<1x8xf32>
    %64 = vector.broadcast %63 : vector<1x8xf32> to vector<8x8xf32>
    %65 = arith.addf %61, %64 : vector<8x8xf32>
    %66 = arith.truncf %65 : vector<8x8xf32> to vector<8x8xbf16>
    %c0_64 = arith.constant 0 : index
    %c2_65 = arith.constant 2 : index
    %c0_66 = arith.constant 0 : index
    %c0_67 = arith.constant 0 : index
    %67 = vector.load %arg8[%c0_64, %c2_65, %c0_66, %c0_67] : memref<1x4x8x8xbf16, #tpu.memory_space<vmem>>, vector<1x1x8x8xbf16>
    %68 = vector.shape_cast %67 : vector<1x1x8x8xbf16> to vector<8x8xbf16>
    %69 = vector.shape_cast %66 : vector<8x8xbf16> to vector<1x1x8x8xbf16>
    tpu.vector_store %arg8[%c0_64, %c2_65, %c0_66, %c0_67], %69 {strides = array<i32>} : memref<1x4x8x8xbf16, #tpu.memory_space<vmem>>, vector<1x1x8x8xbf16>,
    %c3 = arith.constant 3 : index
    %c0_68 = arith.constant 0 : index
    %c0_69 = arith.constant 0 : index
    %70 = vector.load %arg3[%c3, %c0_68, %c0_69] : memref<4x8x32xbf16, #tpu.memory_space<vmem>>, vector<1x8x32xbf16>
    %71 = vector.shape_cast %70 : vector<1x8x32xbf16> to vector<8x32xbf16>
    %cst_70 = arith.constant dense<0.000000e+00> : vector<8x8xf32>
    %72 = tpu.matmul %71, %3, %cst_70 {dimension_numbers = #tpu.dot_dimension_numbers<[1], [0], [0], [1], [0, 0, 1, 1], [], []>} : vector<8x32xbf16>, vector<32x8xbf16>, vector<8x8xf32> -> vector<8x8xf32>
    %c3_71 = arith.constant 3 : index
    %c0_72 = arith.constant 0 : index
    %c0_73 = arith.constant 0 : index
    %73 = vector.load %arg4[%c3_71, %c0_72, %c0_73] : memref<4x8x1xf32, #tpu.memory_space<vmem>>, vector<1x8x1xf32>
    %74 = vector.shape_cast %73 : vector<1x8x1xf32> to vector<8x1xf32>
    %75 = vector.broadcast %74 : vector<8x1xf32> to vector<8x8xf32>
    %76 = arith.addf %72, %75 : vector<8x8xf32>
    %77 = arith.truncf %76 : vector<8x8xf32> to vector<8x8xbf16>
    %c0_74 = arith.constant 0 : index
    %c3_75 = arith.constant 3 : index
    %c0_76 = arith.constant 0 : index
    %c0_77 = arith.constant 0 : index
    %78 = vector.load %arg7[%c0_74, %c3_75, %c0_76, %c0_77] : memref<1x4x8x8xbf16, #tpu.memory_space<vmem>>, vector<1x1x8x8xbf16>
    %79 = vector.shape_cast %78 : vector<1x1x8x8xbf16> to vector<8x8xbf16>
    %80 = vector.shape_cast %77 : vector<8x8xbf16> to vector<1x1x8x8xbf16>
    tpu.vector_store %arg7[%c0_74, %c3_75, %c0_76, %c0_77], %80 {strides = array<i32>} : memref<1x4x8x8xbf16, #tpu.memory_space<vmem>>, vector<1x1x8x8xbf16>,
    %c3_78 = arith.constant 3 : index
    %c0_79 = arith.constant 0 : index
    %c0_80 = arith.constant 0 : index
    %81 = vector.load %arg5[%c3_78, %c0_79, %c0_80] : memref<4x32x8xbf16, #tpu.memory_space<vmem>>, vector<1x32x8xbf16>
    %82 = vector.shape_cast %81 : vector<1x32x8xbf16> to vector<32x8xbf16>
    %cst_81 = arith.constant dense<0.000000e+00> : vector<8x8xf32>
    %83 = tpu.matmul %1, %82, %cst_81 {dimension_numbers = #tpu.dot_dimension_numbers<[1], [0], [0], [1], [0, 0, 1, 1], [], []>} : vector<8x32xbf16>, vector<32x8xbf16>, vector<8x8xf32> -> vector<8x8xf32>
    %c3_82 = arith.constant 3 : index
    %c0_83 = arith.constant 0 : index
    %c0_84 = arith.constant 0 : index
    %84 = vector.load %arg6[%c3_82, %c0_83, %c0_84] : memref<4x1x8xf32, #tpu.memory_space<vmem>>, vector<1x1x8xf32>
    %85 = vector.shape_cast %84 : vector<1x1x8xf32> to vector<1x8xf32>
    %86 = vector.broadcast %85 : vector<1x8xf32> to vector<8x8xf32>
    %87 = arith.addf %83, %86 : vector<8x8xf32>
    %88 = arith.truncf %87 : vector<8x8xf32> to vector<8x8xbf16>
    %c0_85 = arith.constant 0 : index
    %c3_86 = arith.constant 3 : index
    %c0_87 = arith.constant 0 : index
    %c0_88 = arith.constant 0 : index
    %89 = vector.load %arg8[%c0_85, %c3_86, %c0_87, %c0_88] : memref<1x4x8x8xbf16, #tpu.memory_space<vmem>>, vector<1x1x8x8xbf16>
    %90 = vector.shape_cast %89 : vector<1x1x8x8xbf16> to vector<8x8xbf16>
    %91 = vector.shape_cast %88 : vector<8x8xbf16> to vector<1x1x8x8xbf16>
    tpu.vector_store %arg8[%c0_85, %c3_86, %c0_87, %c0_88], %91 {strides = array<i32>} : memref<1x4x8x8xbf16, #tpu.memory_space<vmem>>, vector<1x1x8x8xbf16>,
    return
  }
  func.func @transform_0(%arg0: i32) -> (i32, i32, i32) {
    %c0_i32 = arith.constant 0 : i32
    %c0_i32_0 = arith.constant 0 : i32
    %c0_i32_1 = arith.constant 0 : i32
    return %arg0, %c0_i32, %c0_i32_0 : i32, i32, i32
  }
  func.func @transform_1(%arg0: i32) -> (i32, i32, i32) {
    %c0_i32 = arith.constant 0 : i32
    %c0_i32_0 = arith.constant 0 : i32
    %c0_i32_1 = arith.constant 0 : i32
    return %arg0, %c0_i32, %c0_i32_0 : i32, i32, i32
  }
  func.func @transform_2(%arg0: i32) -> (i32, i32, i32) {
    %c0_i32 = arith.constant 0 : i32
    %c0_i32_0 = arith.constant 0 : i32
    %c0_i32_1 = arith.constant 0 : i32
    %c0_i32_2 = arith.constant 0 : i32
    return %c0_i32, %c0_i32_0, %c0_i32_1 : i32, i32, i32
  }
  func.func @transform_3(%arg0: i32) -> (i32, i32, i32) {
    %c0_i32 = arith.constant 0 : i32
    %c0_i32_0 = arith.constant 0 : i32
    %c0_i32_1 = arith.constant 0 : i32
    %c0_i32_2 = arith.constant 0 : i32
    return %c0_i32, %c0_i32_0, %c0_i32_1 : i32, i32, i32
  }
  func.func @transform_4(%arg0: i32) -> (i32, i32, i32) {
    %c0_i32 = arith.constant 0 : i32
    %c0_i32_0 = arith.constant 0 : i32
    %c0_i32_1 = arith.constant 0 : i32
    %c0_i32_2 = arith.constant 0 : i32
    return %c0_i32, %c0_i32_0, %c0_i32_1 : i32, i32, i32
  }
  func.func @transform_5(%arg0: i32) -> (i32, i32, i32) {
    %c0_i32 = arith.constant 0 : i32
    %c0_i32_0 = arith.constant 0 : i32
    %c0_i32_1 = arith.constant 0 : i32
    %c0_i32_2 = arith.constant 0 : i32
    return %c0_i32, %c0_i32_0, %c0_i32_1 : i32, i32, i32
  }
  func.func @transform_6(%arg0: i32) -> (i32, i32, i32, i32) {
    %c0_i32 = arith.constant 0 : i32
    %c0_i32_0 = arith.constant 0 : i32
    %c0_i32_1 = arith.constant 0 : i32
    %c0_i32_2 = arith.constant 0 : i32
    return %arg0, %c0_i32, %c0_i32_0, %c0_i32_1 : i32, i32, i32, i32
  }
  func.func @transform_7(%arg0: i32) -> (i32, i32, i32, i32) {
    %c0_i32 = arith.constant 0 : i32
    %c0_i32_0 = arith.constant 0 : i32
    %c0_i32_1 = arith.constant 0 : i32
    %c0_i32_2 = arith.constant 0 : i32
    return %arg0, %c0_i32, %c0_i32_0, %c0_i32_1 : i32, i32, i32, i32
  }
}

</mosaic_0001>

<llo_original>
// kernel: tpu_custom_call.1
$region0: #{tpu_custom_call.1}
  #allocation0 [shape = 'u32[]', space=smem, size = 0x4, offset = 0x4, fixed_abs, tag = 'smem constant byte address 0x4 - core index']
  #allocation1 [shape = 'u32[72,128]{1,0:T(1,128)}', space=vmem, size = 0x9000, scoped, tag = 'internal scratch']
  %s0 = inlined_call_operand.vmem [shape: bf16[2,8,32], index: 0, kind: input, shape index: {}]
  %s1 = inlined_call_operand.vmem [shape: bf16[2,32,8], index: 1, kind: input, shape index: {}]
  %s2 = inlined_call_operand.vmem [shape: bf16[4,8,32], index: 2, kind: input, shape index: {}]
  %s3 = inlined_call_operand.vmem [shape: f32[4,8,1], index: 3, kind: input, shape index: {}]
  %s4 = inlined_call_operand.vmem [shape: bf16[4,32,8], index: 4, kind: input, shape index: {}]
  %s5 = inlined_call_operand.vmem [shape: f32[4,1,8], index: 5, kind: input, shape index: {}]
  %s6 = inlined_call_operand.hbm [shape: bf16[2,4,8,8], index: 6, kind: output, shape index: {0}]
  %s7 = inlined_call_operand.hbm [shape: bf16[2,4,8,8], index: 7, kind: output, shape index: {1}]
  %8 = xla_tuple %s6, %s7
  %s9 = sld [smem:[#allocation0]]
  $region65: #{tpu_custom_call.1} parent=0
    _
  %s11 = ssub.s32 1, %s9
  %s12 = scalar_select 0, %s11, %s9
  $region1: #{tpu_custom_call.1} parent=0
    #allocation2 [shape = 'u8[16384]{0}', space=vmem, size = 0x4000, scoped, tag = 'output window, operand 0']
    #allocation3 [shape = 's32[2]{0}', space=sflag, size = 0x8, scoped, tag = 'scoped memory for tpu_custom_call.1']
    #allocation4 [shape = 'u8[16384]{0}', space=vmem, size = 0x4000, scoped, tag = 'output window, operand 1']
    #allocation5 [shape = 's32[2]{0}', space=sflag, size = 0x8, scoped, tag = 'scoped memory for tpu_custom_call.1']
    %13 = vsyncpa [#allocation3], 0
    %s14 = scalar_lea.sflag [#allocation3], 1
    %15 = vsyncpa %s14, 0
    %16 = vsyncpa [#allocation5], 0
    %s17 = scalar_lea.sflag [#allocation5], 1
    %18 = vsyncpa %s17, 0
    loop: start=0, step=1, limit=4
    $region2: #{tpu_custom_call.1} parent=1 // loop_pre_header
      _
    $region3: #{tpu_custom_call.1} parent=1 // loop_header
      %s20 = sphi 0, %s24
      %p21 = scmp.ge.s32.totalorder %s20, 4
      %s30 = sphi 0, %s32
      %s33 = sphi 0, %s30
      %s34 = sphi 0, %s33
      %s50 = sphi 0, %s34
      %s56 = sphi 0, %s58
      %s59 = sphi 0, %s56
      %s60 = sphi 0, %s59
      %s76 = sphi 0, %s60
      %s80 = sphi 0, %s80
      %s82 = sphi 0, %s80
      %s83 = sphi 0, %s82
      %s97 = sphi 0, %s83
      %s101 = sphi 0, %s101
      %s103 = sphi 0, %s101
      %s104 = sphi 0, %s103
      %s118 = sphi 0, %s104
      %s122 = sphi 0, %s122
      %s124 = sphi 0, %s122
      %s125 = sphi 0, %s124
      %s139 = sphi 0, %s125
      %s143 = sphi 0, %s143
      %s145 = sphi 0, %s143
      %s146 = sphi 0, %s145
      %s160 = sphi 0, %s146
      %s166 = sphi 0, %s168
      %s169 = sphi 0, %s166
      %s170 = sphi 0, %s169
      %s186 = sphi 0, %s170
      %s192 = sphi 0, %s194
      %s195 = sphi 0, %s192
      %s196 = sphi 0, %s195
      %s212 = sphi 0, %s196
    $region4: #{tpu_custom_call.1} parent=1 // loop_header_branch
      %23 = sbr.rel (%p21) target = $region8
    $region5: #{tpu_custom_call.1} parent=1 // loop_body
      %s25 = ssub.s32 %s20, 1
      %s26 = ssub.s32 %s20, 2
      %s27 = sadd.s32 %s20, 1
      %s28 = ssub.s32 %s20, %s27
      %p29 = scmp.eq.s32.totalorder %s28, 0
      %s31 = sadd.s32 %s30, 1
      %s32 = scalar_select %p29, %s30, %s31
      %p35 = pneg %p29
      %p36 = scmp.eq.s32.totalorder %s20, 1
      %p37 = por %p35, %p36
      %p38 = scmp.ne.s32.totalorder %s30, %s33
      %p39 = scmp.eq.s32.totalorder %s20, 0
      %p40 = por %p38, %p39
      %p41 = scmp.ne.s32.totalorder %s30, %s33
      %p42 = scmp.eq.s32.totalorder %s25, 1
      %p43 = por %p41, %p42
      %p44 = scmp.ne.s32.totalorder %s33, %s34
      %p45 = scmp.eq.s32.totalorder %s25, 0
      %p46 = por %p44, %p45
      %p47 = scmp.ne.s32.totalorder %s33, %s34
      %p48 = scmp.eq.s32.totalorder %s26, 1
      %p49 = por %p47, %p48
      %p51 = scmp.ne.s32.totalorder %s34, %s50
      %p52 = scmp.eq.s32.totalorder %s26, 0
      %p53 = por %p51, %p52
      %s54 = ssub.s32 %s20, %s27
      %p55 = scmp.eq.s32.totalorder %s54, 0
      %s57 = sadd.s32 %s56, 1
      %s58 = scalar_select %p55, %s56, %s57
      %p61 = pneg %p55
      %p62 = scmp.eq.s32.totalorder %s20, 1
      %p63 = por %p61, %p62
      %p64 = scmp.ne.s32.totalorder %s56, %s59
      %p65 = scmp.eq.s32.totalorder %s20, 0
      %p66 = por %p64, %p65
      %p67 = scmp.ne.s32.totalorder %s56, %s59
      %p68 = scmp.eq.s32.totalorder %s25, 1
      %p69 = por %p67, %p68
      %p70 = scmp.ne.s32.totalorder %s59, %s60
      %p71 = scmp.eq.s32.totalorder %s25, 0
      %p72 = por %p70, %p71
      %p73 = scmp.ne.s32.totalorder %s59, %s60
      %p74 = scmp.eq.s32.totalorder %s26, 1
      %p75 = por %p73, %p74
      %p77 = scmp.ne.s32.totalorder %s60, %s76
      %p78 = scmp.eq.s32.totalorder %s26, 0
      %p79 = por %p77, %p78
      %s81 = sadd.s32 %s80, 1
      %p84 = scmp.eq.s32.totalorder %s20, 1
      %p85 = scmp.ne.s32.totalorder %s80, %s82
      %p86 = scmp.eq.s32.totalorder %s20, 0
      %p87 = por %p85, %p86
      %p88 = scmp.ne.s32.totalorder %s80, %s82
      %p89 = scmp.eq.s32.totalorder %s25, 1
      %p90 = por %p88, %p89
      %p91 = scmp.ne.s32.totalorder %s82, %s83
      %p92 = scmp.eq.s32.totalorder %s25, 0
      %p93 = por %p91, %p92
      %p94 = scmp.ne.s32.totalorder %s82, %s83
      %p95 = scmp.eq.s32.totalorder %s26, 1
      %p96 = por %p94, %p95
      %p98 = scmp.ne.s32.totalorder %s83, %s97
      %p99 = scmp.eq.s32.totalorder %s26, 0
      %p100 = por %p98, %p99
      %s102 = sadd.s32 %s101, 1
      %p105 = scmp.eq.s32.totalorder %s20, 1
      %p106 = scmp.ne.s32.totalorder %s101, %s103
      %p107 = scmp.eq.s32.totalorder %s20, 0
      %p108 = por %p106, %p107
      %p109 = scmp.ne.s32.totalorder %s101, %s103
      %p110 = scmp.eq.s32.totalorder %s25, 1
      %p111 = por %p109, %p110
      %p112 = scmp.ne.s32.totalorder %s103, %s104
      %p113 = scmp.eq.s32.totalorder %s25, 0
      %p114 = por %p112, %p113
      %p115 = scmp.ne.s32.totalorder %s103, %s104
      %p116 = scmp.eq.s32.totalorder %s26, 1
      %p117 = por %p115, %p116
      %p119 = scmp.ne.s32.totalorder %s104, %s118
      %p120 = scmp.eq.s32.totalorder %s26, 0
      %p121 = por %p119, %p120
      %s123 = sadd.s32 %s122, 1
      %p126 = scmp.eq.s32.totalorder %s20, 1
      %p127 = scmp.ne.s32.totalorder %s122, %s124
      %p128 = scmp.eq.s32.totalorder %s20, 0
      %p129 = por %p127, %p128
      %p130 = scmp.ne.s32.totalorder %s122, %s124
      %p131 = scmp.eq.s32.totalorder %s25, 1
      %p132 = por %p130, %p131
      %p133 = scmp.ne.s32.totalorder %s124, %s125
      %p134 = scmp.eq.s32.totalorder %s25, 0
      %p135 = por %p133, %p134
      %p136 = scmp.ne.s32.totalorder %s124, %s125
      %p137 = scmp.eq.s32.totalorder %s26, 1
      %p138 = por %p136, %p137
      %p140 = scmp.ne.s32.totalorder %s125, %s139
      %p141 = scmp.eq.s32.totalorder %s26, 0
      %p142 = por %p140, %p141
      %s144 = sadd.s32 %s143, 1
      %p147 = scmp.eq.s32.totalorder %s20, 1
      %p148 = scmp.ne.s32.totalorder %s143, %s145
      %p149 = scmp.eq.s32.totalorder %s20, 0
      %p150 = por %p148, %p149
      %p151 = scmp.ne.s32.totalorder %s143, %s145
      %p152 = scmp.eq.s32.totalorder %s25, 1
      %p153 = por %p151, %p152
      %p154 = scmp.ne.s32.totalorder %s145, %s146
      %p155 = scmp.eq.s32.totalorder %s25, 0
      %p156 = por %p154, %p155
      %p157 = scmp.ne.s32.totalorder %s145, %s146
      %p158 = scmp.eq.s32.totalorder %s26, 1
      %p159 = por %p157, %p158
      %p161 = scmp.ne.s32.totalorder %s146, %s160
      %p162 = scmp.eq.s32.totalorder %s26, 0
      %p163 = por %p161, %p162
      %s164 = ssub.s32 %s20, %s27
      %p165 = scmp.eq.s32.totalorder %s164, 0
      %s167 = sadd.s32 %s166, 1
      %s168 = scalar_select %p165, %s166, %s167
      %p171 = pneg %p165
      %p172 = scmp.eq.s32.totalorder %s20, 1
      %p173 = por %p171, %p172
      %p174 = scmp.ne.s32.totalorder %s166, %s169
      %p175 = scmp.eq.s32.totalorder %s20, 0
      %p176 = por %p174, %p175
      %p177 = scmp.ne.s32.totalorder %s166, %s169
      %p178 = scmp.eq.s32.totalorder %s25, 1
      %p179 = por %p177, %p178
      %p180 = scmp.ne.s32.totalorder %s169, %s170
      %p181 = scmp.eq.s32.totalorder %s25, 0
      %p182 = por %p180, %p181
      %p183 = scmp.ne.s32.totalorder %s169, %s170
      %p184 = scmp.eq.s32.totalorder %s26, 1
      %p185 = por %p183, %p184
      %p187 = scmp.ne.s32.totalorder %s170, %s186
      %p188 = scmp.eq.s32.totalorder %s26, 0
      %p189 = por %p187, %p188
      %s190 = ssub.s32 %s20, %s27
      %p191 = scmp.eq.s32.totalorder %s190, 0
      %s193 = sadd.s32 %s192, 1
      %s194 = scalar_select %p191, %s192, %s193
      %p197 = pneg %p191
      %p198 = scmp.eq.s32.totalorder %s20, 1
      %p199 = por %p197, %p198
      %p200 = scmp.ne.s32.totalorder %s192, %s195
      %p201 = scmp.eq.s32.totalorder %s20, 0
      %p202 = por %p200, %p201
      %p203 = scmp.ne.s32.totalorder %s192, %s195
      %p204 = scmp.eq.s32.totalorder %s25, 1
      %p205 = por %p203, %p204
      %p206 = scmp.ne.s32.totalorder %s195, %s196
      %p207 = scmp.eq.s32.totalorder %s25, 0
      %p208 = por %p206, %p207
      %p209 = scmp.ne.s32.totalorder %s195, %s196
      %p210 = scmp.eq.s32.totalorder %s26, 1
      %p211 = por %p209, %p210
      %p213 = scmp.ne.s32.totalorder %s196, %s212
      %p214 = scmp.eq.s32.totalorder %s26, 0
      %p215 = por %p213, %p214
      %p216 = scmp.le.s32.totalorder 1, %s20
      %p217 = scmp.lt.s32.totalorder %s20, 3
      %p218 = pnand %p216, %p217
      %p219 = pneg %p218
      // Predicated region
      $region9: #{tpu_custom_call.1} parent=5 // pred_check
        _
      $region10: #{tpu_custom_call.1} parent=5 // pred_check_branch
        %221 = sbr.rel (%p218) target = $region12
      $region11: #{tpu_custom_call.1} parent=5 // pred_region
        %s222 = ssub.s32 %s20, 1
        // Predicated region
        $region13: #{tpu_custom_call.1} parent=11 // pred_check
          %p223 = pneg %p93
        $region14: #{tpu_custom_call.1} parent=11 // pred_check_branch
          %225 = sbr.rel (%p223) target = $region16
        $region15: #{tpu_custom_call.1} parent=11 // pred_region
          _
        $region16: #{tpu_custom_call.1} parent=11 // pred_fallthru
          _
        // Predicated region
        $region17: #{tpu_custom_call.1} parent=11 // pred_check
          %p226 = pneg %p114
        $region18: #{tpu_custom_call.1} parent=11 // pred_check_branch
          %228 = sbr.rel (%p226) target = $region20
        $region19: #{tpu_custom_call.1} parent=11 // pred_region
          _
        $region20: #{tpu_custom_call.1} parent=11 // pred_fallthru
          _
        // Predicated region
        $region21: #{tpu_custom_call.1} parent=11 // pred_check
          %p229 = pneg %p135
        $region22: #{tpu_custom_call.1} parent=11 // pred_check_branch
          %231 = sbr.rel (%p229) target = $region24
        $region23: #{tpu_custom_call.1} parent=11 // pred_region
          _
        $region24: #{tpu_custom_call.1} parent=11 // pred_fallthru
          _
        // Predicated region
        $region25: #{tpu_custom_call.1} parent=11 // pred_check
          %p232 = pneg %p156
        $region26: #{tpu_custom_call.1} parent=11 // pred_check_branch
          %234 = sbr.rel (%p232) target = $region28
        $region27: #{tpu_custom_call.1} parent=11 // pred_region
          _
        $region28: #{tpu_custom_call.1} parent=11 // pred_fallthru
          _
      $region12: #{tpu_custom_call.1} parent=5 // pred_fallthru
        _
      %p235 = scmp.lt.s32.totalorder %s20, 2
      // Predicated region
      $region29: #{tpu_custom_call.1} parent=5 // pred_check
        %p236 = pneg %p235
      $region30: #{tpu_custom_call.1} parent=5 // pred_check_branch
        %238 = sbr.rel (%p236) target = $region32
      $region31: #{tpu_custom_call.1} parent=5 // pred_region
        // Predicated region
        $region33: #{tpu_custom_call.1} parent=31 // pred_check
          %p239 = pneg %p40
        $region34: #{tpu_custom_call.1} parent=31 // pred_check_branch
          %241 = sbr.rel (%p239) target = $region36
        $region35: #{tpu_custom_call.1} parent=31 // pred_region
          %p242 = scmp.lt.s32.totalorder %s20, 1
          %s243 = scalar_select %p242, %s20, 1
          %s244 = smul.addr %s243, 4
          %s245 = scalar_lea.vmem %s0, %s244
        $region36: #{tpu_custom_call.1} parent=31 // pred_fallthru
          _
        // Predicated region
        $region37: #{tpu_custom_call.1} parent=31 // pred_check
          %p246 = pneg %p66
        $region38: #{tpu_custom_call.1} parent=31 // pred_check_branch
          %248 = sbr.rel (%p246) target = $region40
        $region39: #{tpu_custom_call.1} parent=31 // pred_region
          %p249 = scmp.lt.s32.totalorder %s20, 1
          %s250 = scalar_select %p249, %s20, 1
          %s251 = smul.addr %s250, 4
          %s252 = smul.addr %s251, 4
          %s253 = scalar_lea.vmem %s1, %s252
        $region40: #{tpu_custom_call.1} parent=31 // pred_fallthru
          _
      $region32: #{tpu_custom_call.1} parent=5 // pred_fallthru
        _
      %p254 = scmp.le.s32.totalorder 1, %s20
      %p255 = scmp.lt.s32.totalorder %s20, 3
      %p256 = pnand %p254, %p255
      %p257 = pneg %p256
      // Predicated region
      $region41: #{tpu_custom_call.1} parent=5 // pred_check
        _
      $region42: #{tpu_custom_call.1} parent=5 // pred_check_branch
        %259 = sbr.rel (%p256) target = $region44
      $region43: #{tpu_custom_call.1} parent=5 // pred_region
        %s260 = ssub.s32 %s20, 1
        %p261 = scmp.lt.s32.totalorder %s25, 1
        %s262 = scalar_select %p261, %s25, 1
        %s263 = smul.addr %s262, 4
        %s264 = scalar_lea.vmem %s0, %s263
        %p265 = pneg %p46
        %p266 = pneg %p43
        %p267 = scmp.lt.s32.totalorder %s25, 1
        %s268 = scalar_select %p267, %s25, 1
        %s269 = smul.addr %s268, 4
        %s270 = smul.addr %s269, 4
        %s271 = scalar_lea.vmem %s1, %s270
        %p272 = pneg %p72
        %p273 = pneg %p69
        %p274 = pneg %p93
        %p275 = pneg %p90
        %p276 = pneg %p114
        %p277 = pneg %p111
        %p278 = pneg %p135
        %p279 = pneg %p132
        %p280 = pneg %p156
        %p281 = pneg %p153
        %p282 = pneg %p182
        %p283 = pneg %p179
        %s284 = sand.u32 %s169, 1
        %s285 = scalar_lea.sflag [#allocation3], %s284
        %s286 = sand.u32 %s169, 1
        %s287 = smul.addr %s286, 16
        %s288 = scalar_lea.vmem [#allocation2], %s287
        %p289 = pneg %p208
        %p290 = pneg %p205
        %s291 = sand.u32 %s195, 1
        %s292 = scalar_lea.sflag [#allocation5], %s291
        %s293 = sand.u32 %s195, 1
        %s294 = smul.addr %s293, 16
        %s295 = scalar_lea.vmem [#allocation4], %s294
        %p296 = scmp.lt.s32.totalorder %s25, 1
        %s297 = scalar_select %p296, %s25, 1
        %s298 = smul.addr %s297, 4
        %s299 = scalar_lea.vmem %s0, %s298
        %p300 = scmp.lt.s32.totalorder %s25, 1
        %s301 = scalar_select %p300, %s25, 1
        %s302 = smul.addr %s301, 4
        %s303 = smul.addr %s302, 4
        %s304 = scalar_lea.vmem %s1, %s303
        %v306 = vld [vmem:[%s299] sm:$0xf]
        %v307 = vld [vmem:[%s304] sm:$0xf]
        %v308 = vld [vmem:[%s304 + $0x4] sm:$0xf]
        %v309 = vld [vmem:[%s304 + $0x8] sm:$0xf]
        %v310 = vld [vmem:[%s304 + $0xc] sm:$0xf]
        %v311 = vld [vmem:[%s2] sm:$0xf]
        %v312 = vld [vmem:[%s3] sm:$0xff]
        %314 = vset.pattern.permute.xlu0 0
        %315 = vperm.xlu0 %314, %v312
        %v316 = vpop.permute.xlu0 %315
        %v322 = vunpack.c.l.b16 %v307
        %v323 = vunpack.c.l.b16 %v308
        %v324 = vunpack.c.l.b16 %v309
        %v325 = vunpack.c.l.b16 %v310
        %v326 = vpack.c.b16 %v323, %v322
        %v327 = vpack.c.b16 %v325, %v324
        %vm330 = vcmask 261120
        %v332 = vsel %vm330, %v311, 0
        %334 = vmatpush.bf16.msra.mxu0 0
        %335 = vmatpush.bf16.msra.mxu0 0
        %336 = vmatpush.bf16.msra.mxu0 0
        %337 = vmatpush.bf16.msra.mxu0 0
        %338 = vmatpush.bf16.msra.mxu0 0
        %339 = vmatpush.bf16.msra.mxu0 0
        %340 = vmatpush.bf16.msra.mxu0 %v327
        %341 = vmatpush.bf16.msra.mxu0 %v326
        %342 = vmatmul.bf16.gmra.mxu0 %v332
        %v343 = vpop.f32.mrf.mxu0
        %v344 = vadd.f32 %v316, %v343
        %v345 = vpop.f32.mrf.mxu0
        %346 = vdwg.mxu0
        %v347 = vpack.c.bf16 %v344, %v344
        %vm348 = vcmask 60416
        %349 = vst.msk [vmem:[%s288] sm:$0xf] %vm348, %v347
        %v350 = vld [vmem:[%s4] sm:$0xf]
        %v351 = vld [vmem:[%s4 + $0x4] sm:$0xf]
        %v352 = vld [vmem:[%s4 + $0x8] sm:$0xf]
        %v353 = vld [vmem:[%s4 + $0xc] sm:$0xf]
        %v354 = vld [vmem:[%s5] sm:$0x1]
        %v356 = vperm.slane %v354, 0
        %v362 = vunpack.c.l.b16 %v350
        %v363 = vunpack.c.l.b16 %v351
        %v364 = vunpack.c.l.b16 %v352
        %v365 = vunpack.c.l.b16 %v353
        %v366 = vpack.c.b16 %v363, %v362
        %v367 = vpack.c.b16 %v365, %v364
        %v371 = vsel %vm330, %v306, 0
        %373 = vmatpush.bf16.msra.mxu0 0
        %374 = vmatpush.bf16.msra.mxu0 0
        %375 = vmatpush.bf16.msra.mxu0 0
        %376 = vmatpush.bf16.msra.mxu0 0
        %377 = vmatpush.bf16.msra.mxu0 0
        %378 = vmatpush.bf16.msra.mxu0 0
        %379 = vmatpush.bf16.msra.mxu0 %v367
        %380 = vmatpush.bf16.msra.mxu0 %v366
        %381 = vmatmul.bf16.gmra.mxu0 %v371
        %v382 = vpop.f32.mrf.mxu0
        %v383 = vadd.f32 %v356, %v382
        %v384 = vpop.f32.mrf.mxu0
        %385 = vdwg.mxu0
        %v386 = vpack.c.bf16 %v383, %v383
        %387 = vst.msk [vmem:[%s295] sm:$0xf] %vm348, %v386
        %s388 = scalar_lea.vmem %s2, 4
        %v389 = vld [vmem:[%s388] sm:$0xf]
        %s390 = scalar_lea.vmem %s3, 8
        %v391 = vld [vmem:[%s390] sm:$0xff]
        %393 = vset.pattern.permute.xlu0 0
        %394 = vperm.xlu0 %393, %v391
        %v395 = vpop.permute.xlu0 %394
        %v398 = vsel %vm330, %v389, 0
        %400 = vmatpush.bf16.msra.mxu0 0
        %401 = vmatpush.bf16.msra.mxu0 0
        %402 = vmatpush.bf16.msra.mxu0 0
        %403 = vmatpush.bf16.msra.mxu0 0
        %404 = vmatpush.bf16.msra.mxu0 0
        %405 = vmatpush.bf16.msra.mxu0 0
        %406 = vmatpush.bf16.msra.mxu0 %v327
        %407 = vmatpush.bf16.msra.mxu0 %v326
        %408 = vmatmul.bf16.gmra.mxu0 %v398
        %v409 = vpop.f32.mrf.mxu0
        %v410 = vadd.f32 %v395, %v409
        %v411 = vpop.f32.mrf.mxu0
        %412 = vdwg.mxu0
        %v413 = vpack.c.bf16 %v410, %v410
        %s414 = scalar_lea.vmem %s288, 4 [#allocation2]
        %415 = vst.msk [vmem:[%s414] sm:$0xf] %vm348, %v413
        %s416 = scalar_lea.vmem %s4, 16
        %v417 = vld [vmem:[%s416] sm:$0xf]
        %v418 = vld [vmem:[%s416 + $0x4] sm:$0xf]
        %v419 = vld [vmem:[%s416 + $0x8] sm:$0xf]
        %v420 = vld [vmem:[%s416 + $0xc] sm:$0xf]
        %s421 = scalar_lea.vmem %s5, 1
        %v422 = vld [vmem:[%s421] sm:$0x1]
        %v424 = vperm.slane %v422, 0
        %v430 = vunpack.c.l.b16 %v417
        %v431 = vunpack.c.l.b16 %v418
        %v432 = vunpack.c.l.b16 %v419
        %v433 = vunpack.c.l.b16 %v420
        %v434 = vpack.c.b16 %v431, %v430
        %v435 = vpack.c.b16 %v433, %v432
        %438 = vmatpush.bf16.msra.mxu0 0
        %439 = vmatpush.bf16.msra.mxu0 0
        %440 = vmatpush.bf16.msra.mxu0 0
        %441 = vmatpush.bf16.msra.mxu0 0
        %442 = vmatpush.bf16.msra.mxu0 0
        %443 = vmatpush.bf16.msra.mxu0 0
        %444 = vmatpush.bf16.msra.mxu0 %v435
        %445 = vmatpush.bf16.msra.mxu0 %v434
        %446 = vmatmul.bf16.gmra.mxu0 %v371
        %v447 = vpop.f32.mrf.mxu0
        %v448 = vadd.f32 %v424, %v447
        %v449 = vpop.f32.mrf.mxu0
        %450 = vdwg.mxu0
        %v451 = vpack.c.bf16 %v448, %v448
        %s452 = scalar_lea.vmem %s295, 4 [#allocation4]
        %453 = vst.msk [vmem:[%s452] sm:$0xf] %vm348, %v451
        %s454 = scalar_lea.vmem %s2, 8
        %v455 = vld [vmem:[%s454] sm:$0xf]
        %s456 = scalar_lea.vmem %s3, 16
        %v457 = vld [vmem:[%s456] sm:$0xff]
        %459 = vset.pattern.permute.xlu0 0
        %460 = vperm.xlu0 %459, %v457
        %v461 = vpop.permute.xlu0 %460
        %v464 = vsel %vm330, %v455, 0
        %466 = vmatpush.bf16.msra.mxu0 0
        %467 = vmatpush.bf16.msra.mxu0 0
        %468 = vmatpush.bf16.msra.mxu0 0
        %469 = vmatpush.bf16.msra.mxu0 0
        %470 = vmatpush.bf16.msra.mxu0 0
        %471 = vmatpush.bf16.msra.mxu0 0
        %472 = vmatpush.bf16.msra.mxu0 %v327
        %473 = vmatpush.bf16.msra.mxu0 %v326
        %474 = vmatmul.bf16.gmra.mxu0 %v464
        %v475 = vpop.f32.mrf.mxu0
        %v476 = vadd.f32 %v461, %v475
        %v477 = vpop.f32.mrf.mxu0
        %478 = vdwg.mxu0
        %v479 = vpack.c.bf16 %v476, %v476
        %s480 = scalar_lea.vmem %s288, 8 [#allocation2]
        %481 = vst.msk [vmem:[%s480] sm:$0xf] %vm348, %v479
        %s482 = scalar_lea.vmem %s4, 32
        %v483 = vld [vmem:[%s482] sm:$0xf]
        %v484 = vld [vmem:[%s482 + $0x4] sm:$0xf]
        %v485 = vld [vmem:[%s482 + $0x8] sm:$0xf]
        %v486 = vld [vmem:[%s482 + $0xc] sm:$0xf]
        %s487 = scalar_lea.vmem %s5, 2
        %v488 = vld [vmem:[%s487] sm:$0x1]
        %v490 = vperm.slane %v488, 0
        %v496 = vunpack.c.l.b16 %v483
        %v497 = vunpack.c.l.b16 %v484
        %v498 = vunpack.c.l.b16 %v485
        %v499 = vunpack.c.l.b16 %v486
        %v500 = vpack.c.b16 %v497, %v496
        %v501 = vpack.c.b16 %v499, %v498
        %504 = vmatpush.bf16.msra.mxu0 0
        %505 = vmatpush.bf16.msra.mxu0 0
        %506 = vmatpush.bf16.msra.mxu0 0
        %507 = vmatpush.bf16.msra.mxu0 0
        %508 = vmatpush.bf16.msra.mxu0 0
        %509 = vmatpush.bf16.msra.mxu0 0
        %510 = vmatpush.bf16.msra.mxu0 %v501
        %511 = vmatpush.bf16.msra.mxu0 %v500
        %512 = vmatmul.bf16.gmra.mxu0 %v371
        %v513 = vpop.f32.mrf.mxu0
        %v514 = vadd.f32 %v490, %v513
        %v515 = vpop.f32.mrf.mxu0
        %516 = vdwg.mxu0
        %v517 = vpack.c.bf16 %v514, %v514
        %s518 = scalar_lea.vmem %s295, 8 [#allocation4]
        %519 = vst.msk [vmem:[%s518] sm:$0xf] %vm348, %v517
        %s520 = scalar_lea.vmem %s2, 12
        %v521 = vld [vmem:[%s520] sm:$0xf]
        %s522 = scalar_lea.vmem %s3, 24
        %v523 = vld [vmem:[%s522] sm:$0xff]
        %525 = vset.pattern.permute.xlu0 0
        %526 = vperm.xlu0 %525, %v523
        %v527 = vpop.permute.xlu0 %526
        %v530 = vsel %vm330, %v521, 0
        %532 = vmatpush.bf16.msra.mxu0 0
        %533 = vmatpush.bf16.msra.mxu0 0
        %534 = vmatpush.bf16.msra.mxu0 0
        %535 = vmatpush.bf16.msra.mxu0 0
        %536 = vmatpush.bf16.msra.mxu0 0
        %537 = vmatpush.bf16.msra.mxu0 0
        %538 = vmatpush.bf16.msra.mxu0 %v327
        %539 = vmatpush.bf16.msra.mxu0 %v326
        %540 = vmatmul.bf16.gmra.mxu0 %v530
        %v541 = vpop.f32.mrf.mxu0
        %v542 = vadd.f32 %v527, %v541
        %v543 = vpop.f32.mrf.mxu0
        %544 = vdwg.mxu0
        %v545 = vpack.c.bf16 %v542, %v542
        %s546 = scalar_lea.vmem %s288, 12 [#allocation2]
        %547 = vst.msk [vmem:[%s546] sm:$0xf] %vm348, %v545
        %s548 = scalar_lea.vmem %s4, 48
        %v549 = vld [vmem:[%s548] sm:$0xf]
        %v550 = vld [vmem:[%s548 + $0x4] sm:$0xf]
        %v551 = vld [vmem:[%s548 + $0x8] sm:$0xf]
        %v552 = vld [vmem:[%s548 + $0xc] sm:$0xf]
        %s553 = scalar_lea.vmem %s5, 3
        %v554 = vld [vmem:[%s553] sm:$0x1]
        %v556 = vperm.slane %v554, 0
        %v562 = vunpack.c.l.b16 %v549
        %v563 = vunpack.c.l.b16 %v550
        %v564 = vunpack.c.l.b16 %v551
        %v565 = vunpack.c.l.b16 %v552
        %v566 = vpack.c.b16 %v563, %v562
        %v567 = vpack.c.b16 %v565, %v564
        %570 = vmatpush.bf16.msra.mxu0 0
        %571 = vmatpush.bf16.msra.mxu0 0
        %572 = vmatpush.bf16.msra.mxu0 0
        %573 = vmatpush.bf16.msra.mxu0 0
        %574 = vmatpush.bf16.msra.mxu0 0
        %575 = vmatpush.bf16.msra.mxu0 0
        %576 = vmatpush.bf16.msra.mxu0 %v567
        %577 = vmatpush.bf16.msra.mxu0 %v566
        %578 = vmatmul.bf16.gmra.mxu0 %v371
        %v579 = vpop.f32.mrf.mxu0
        %v580 = vadd.f32 %v556, %v579
        %v581 = vpop.f32.mrf.mxu0
        %582 = vdwg.mxu0
        %v583 = vpack.c.bf16 %v580, %v580
        %s584 = scalar_lea.vmem %s295, 12 [#allocation4]
        %585 = vst.msk [vmem:[%s584] sm:$0xf] %vm348, %v583
        %s586 = sand.u32 %s169, 1
        %s587 = scalar_lea.sflag [#allocation3], %s586
        %s588 = sand.u32 %s169, 1
        %s589 = smul.addr %s588, 16
        %s590 = scalar_lea.vmem [#allocation2], %s589
        %s591 = sand.u32 %s195, 1
        %s592 = scalar_lea.sflag [#allocation5], %s591
        %s593 = sand.u32 %s195, 1
        %s594 = smul.addr %s593, 16
        %s595 = scalar_lea.vmem [#allocation4], %s594
        // Predicated region
        $region45: #{tpu_custom_call.1} parent=43 // pred_check
          %p596 = pneg %p179
        $region46: #{tpu_custom_call.1} parent=43 // pred_check_branch
          %598 = sbr.rel (%p596) target = $region48
        $region47: #{tpu_custom_call.1} parent=43 // pred_region
          %600 = vsyncadd %s587, 0
          %s601 = smul.addr %s25, 4
          %s602 = smul.addr %s601, 4
          %s603 = scalar_lea.hbm %s6, %s602
          %s604 = sshll.u32 %s590, 4
          %s605 = int_to_ptr.vmem [resolvable:$true] %s604
          %s606 = sshll.u32 %s603, 4
          %s607 = int_to_ptr.hbm [resolvable:$true] %s606
          %612 = dma.vmem_to_hbm [thread:$0]  %s605, 256, %s607, %s587, 64, 64, 4
        $region48: #{tpu_custom_call.1} parent=43 // pred_fallthru
          _
        // Predicated region
        $region49: #{tpu_custom_call.1} parent=43 // pred_check
          %p613 = pneg %p205
        $region50: #{tpu_custom_call.1} parent=43 // pred_check_branch
          %615 = sbr.rel (%p613) target = $region52
        $region51: #{tpu_custom_call.1} parent=43 // pred_region
          %617 = vsyncadd %s592, 0
          %s618 = smul.addr %s25, 4
          %s619 = smul.addr %s618, 4
          %s620 = scalar_lea.hbm %s7, %s619
          %s621 = sshll.u32 %s595, 4
          %s622 = int_to_ptr.vmem [resolvable:$true] %s621
          %s623 = sshll.u32 %s620, 4
          %s624 = int_to_ptr.hbm [resolvable:$true] %s623
          %629 = dma.vmem_to_hbm [thread:$0]  %s622, 256, %s624, %s592, 64, 64, 4
        $region52: #{tpu_custom_call.1} parent=43 // pred_fallthru
          _
      $region44: #{tpu_custom_call.1} parent=5 // pred_fallthru
        _
      %p630 = scmp.le.s32.totalorder 2, %s20
      // Predicated region
      $region53: #{tpu_custom_call.1} parent=5 // pred_check
        %p631 = pneg %p630
      $region54: #{tpu_custom_call.1} parent=5 // pred_check_branch
        %633 = sbr.rel (%p631) target = $region56
      $region55: #{tpu_custom_call.1} parent=5 // pred_region
        %s634 = ssub.s32 %s20, 2
        // Predicated region
        $region57: #{tpu_custom_call.1} parent=55 // pred_check
          %p635 = pneg %p185
        $region58: #{tpu_custom_call.1} parent=55 // pred_check_branch
          %637 = sbr.rel (%p635) target = $region60
        $region59: #{tpu_custom_call.1} parent=55 // pred_region
          %s638 = sand.u32 %s170, 1
          %s639 = scalar_lea.sflag [#allocation3], %s638
          %s640 = sand.u32 %s170, 1
          %s641 = smul.addr %s640, 16
          %s642 = scalar_lea.vmem [#allocation2], %s641
          %644 = dma.done %s639, 256
        $region60: #{tpu_custom_call.1} parent=55 // pred_fallthru
          _
        // Predicated region
        $region61: #{tpu_custom_call.1} parent=55 // pred_check
          %p645 = pneg %p211
        $region62: #{tpu_custom_call.1} parent=55 // pred_check_branch
          %647 = sbr.rel (%p645) target = $region64
        $region63: #{tpu_custom_call.1} parent=55 // pred_region
          %s648 = sand.u32 %s196, 1
          %s649 = scalar_lea.sflag [#allocation5], %s648
          %s650 = sand.u32 %s196, 1
          %s651 = smul.addr %s650, 16
          %s652 = scalar_lea.vmem [#allocation4], %s651
          %654 = dma.done %s649, 256
        $region64: #{tpu_custom_call.1} parent=55 // pred_fallthru
          _
      $region56: #{tpu_custom_call.1} parent=5 // pred_fallthru
        _
    $region6: #{tpu_custom_call.1} parent=1 // loop_footer
      %s24 = sadd.s32 1, %s20
    $region7: #{tpu_custom_call.1} parent=1 // loop_footer_branch
      %19 = sbr.rel target = $region3
    $region8: #{tpu_custom_call.1} parent=1 // loop_exit
      _
    %655 = vsyncpa [#allocation3], 1
    %s656 = scalar_lea.sflag [#allocation3], 1
    %657 = vsyncpa %s656, 1
    %658 = vsyncpa [#allocation5], 1
    %s659 = scalar_lea.sflag [#allocation5], 1
    %660 = vsyncpa %s659, 1

</llo_original>
